<compile_context>
chip_gen: v5e
topology: v5e:2x2
jax: 0.10.0
libtpu: 0.0.40
codegen_flags: <defaults>
</compile_context>

<pallas_src>
import functools

import jax
import jax.numpy as jnp
from jax.experimental import pallas as pl
from jax.experimental.pallas import tpu as pltpu

_LANE = 128


# ----------------------------------------------------------------------------
# Hardware-aware budgets
# ----------------------------------------------------------------------------

@functools.lru_cache(maxsize=1)
def _vmem_capacity_bytes():
    try:
        info = pltpu.get_tpu_info()
        for name in ("vmem_capacity_bytes", "vmem_size_bytes", "vmem_bytes"):
            v = getattr(info, name, None)
            if v:
                return int(v)
    except Exception:
        pass
    try:
        kind = jax.devices()[0].device_kind.lower()
        if "7" in kind:
            return 64 * 1024 * 1024
        if any(t in kind for t in ("v3", "v4", "v5", "v6")):
            return 128 * 1024 * 1024
    except Exception:
        pass
    return 64 * 1024 * 1024          # conservative default (v7x-sized)


def _budgets():
    v = _vmem_capacity_bytes()
    if v >= 100 * 1024 * 1024:       # v4 / v5e / v5p / v6e: 128 MiB physical
        return dict(a_tile=16 << 20, vmem_cap=96 << 20,
                    in_single=32 << 20, in_blk=8 << 20)
    # v7x: 64 MiB physical -> leave headroom below the cap
    return dict(a_tile=6 << 20, vmem_cap=48 << 20,
                in_single=12 << 20, in_blk=4 << 20)


# ----------------------------------------------------------------------------
# Pallas kernels
# ----------------------------------------------------------------------------

def _matmul_bias_kernel(b_ref, a_ref, bias_ref, o_ref):
    # b: (Cout, K), a: (K, TM), bias: (Cout, 1) -> o: (Cout, TM)  (lane-dense)
    o_ref[...] = (
        jnp.dot(b_ref[...], a_ref[...], preferred_element_type=jnp.float32)
        + bias_ref[...]
    ).astype(o_ref.dtype)


def _matmul_T(B, A, bias, compute_dtype=jnp.bfloat16, out_dtype=jnp.float32):
    """(Cout, K) @ (K, M) + bias -> (Cout, M), tiled over M (lane axis)."""
    Cout, K = B.shape
    K2, M = A.shape
    assert K == K2
    bias2 = bias.reshape(Cout, 1).astype(jnp.float32)

    if compute_dtype == jnp.float32:
        # f32 path (flow-field convs, 1e-5-std weights): keep true f32 matmul
        # accuracy; Cout=3 so this is tiny and memory bound -> plain XLA dot.
        out = jnp.dot(B.astype(jnp.float32), A.astype(jnp.float32),
                      precision=jax.lax.Precision.HIGHEST,
                      preferred_element_type=jnp.float32) + bias2
        return out.astype(out_dtype)

    if M < 512 or Cout * K * M < 1_000_000:
        # tiny problem: pallas_call launch overhead dominates
        out = jnp.dot(B.astype(compute_dtype), A.astype(compute_dtype),
                      preferred_element_type=jnp.float32) + bias2
        return out.astype(out_dtype)

    A = A.astype(compute_dtype)
    B = B.astype(compute_dtype)
    isz = jnp.dtype(compute_dtype).itemsize
    osz = jnp.dtype(out_dtype).itemsize
    bud = _budgets()

    # TM sized by a per-generation VMEM byte budget for the (K, TM) A tile,
    # rounded down to the 128-lane granularity, capped at 4096 lanes.
    TM = (bud["a_tile"] // max(1, K * isz)) // _LANE * _LANE
    TM = max(_LANE, min(TM, 4096, M))
    if TM >= M:
        # keep the grid >= 2 so both v7x TensorCores (and the DMA pipeline)
        # have work; M >= 512 here so the split lands on a 128 boundary.
        TM = min(M, ((M + 1) // 2 + _LANE - 1) // _LANE * _LANE)

    def _vmem_est(tm):
        return (2 * K * tm * isz          # double-buffered A tile
                + 2 * Cout * K * isz      # B (constant index; fetched once)
                + 2 * Cout * tm * osz     # double-buffered out tile
                + 2 * Cout * 4
                + (2 << 20))              # margin for Mosaic scratch

    while TM > _LANE and _vmem_est(TM) > bud["vmem_cap"]:
        TM = max(_LANE, (TM // 2) // _LANE * _LANE)

    vmem_limit = int(min(max(_vmem_est(TM), 32 << 20), bud["vmem_cap"]))

    out = pl.pallas_call(
        _matmul_bias_kernel,
        out_shape=jax.ShapeDtypeStruct((Cout, M), out_dtype),
        grid=(pl.cdiv(M, TM),),
        in_specs=[
            pl.BlockSpec((Cout, K), lambda i: (0, 0)),
            pl.BlockSpec((K, TM), lambda i: (0, i)),
            pl.BlockSpec((Cout, 1), lambda i: (0, 0)),
        ],
        out_specs=pl.BlockSpec((Cout, TM), lambda i: (0, i)),
        compiler_params=pltpu.CompilerParams(
            dimension_semantics=("parallel",),
            vmem_limit_bytes=vmem_limit,
        ),
    )(B, A, bias2)
    return out  # (Cout, M)


def _instnorm_lrelu_kernel(x_ref, o_ref):
    # x: (TR, S).  InstanceNorm3d (no affine, eps=1e-5, biased var) + LeakyReLU(0.1)
    x = x_ref[...].astype(jnp.float32)
    mean = jnp.mean(x, axis=-1, keepdims=True)
    var = jnp.mean(jnp.square(x - mean), axis=-1, keepdims=True)
    y = (x - mean) * jax.lax.rsqrt(var + 1e-5)
    o_ref[...] = jnp.where(y >= 0.0, y, 0.1 * y).astype(o_ref.dtype)


def _in_norm_apply_kernel(x_ref, mean_ref, rstd_ref, o_ref):
    # normalize + LeakyReLU given precomputed per-row stats (two-pass path)
    x = x_ref[...].astype(jnp.float32)
    y = (x - mean_ref[...]) * rstd_ref[...]
    o_ref[...] = jnp.where(y >= 0.0, y, 0.1 * y).astype(o_ref.dtype)


def _instnorm_lrelu_ref(x2, out_dtype):
    xf = x2.astype(jnp.float32)
    mean = jnp.mean(xf, axis=-1, keepdims=True)
    var = jnp.mean(jnp.square(xf - mean), axis=-1, keepdims=True)
    y = (xf - mean) * jax.lax.rsqrt(var + 1e-5)
    return jnp.where(y >= 0.0, y, 0.1 * y).astype(out_dtype)


def instnorm_lrelu(x):
    N, C, D, H, W = x.shape
    R, S = N * C, D * H * W
    dt = x.dtype
    isz = jnp.dtype(dt).itemsize
    x2 = x.reshape(R, S)
    bud = _budgets()

    if S < 128 or R * S * isz < (64 << 10):
        # tiny volume: a pallas_call is pure launch overhead here
        return _instnorm_lrelu_ref(x2, dt).reshape(N, C, D, H, W)

    sub = 8 if isz >= 4 else (16 if isz == 2 else 32)

    if sub * S * 4 <= bud["in_single"]:
        # single fused pass: one HBM read + one write per element
        if R <= sub:
            TR = R
        else:
            TR = min(R, max(sub, (bud["in_blk"] // (S * 4)) // sub * sub))
        vmem_limit = int(min(max(10 * TR * S * 4, 32 << 20), bud["vmem_cap"]))
        out = pl.pallas_call(
            _instnorm_lrelu_kernel,
            out_shape=jax.ShapeDtypeStruct((R, S), dt),
            grid=(pl.cdiv(R, TR),),
            in_specs=[pl.BlockSpec((TR, S), lambda i: (i, 0))],
            out_specs=pl.BlockSpec((TR, S), lambda i: (i, 0)),
            compiler_params=pltpu.CompilerParams(
                dimension_semantics=("parallel",),
                vmem_limit_bytes=vmem_limit,
            ),
        )(x2)
        return out.reshape(N, C, D, H, W)

    # two-pass: per-row stats in one fused XLA read, normalize + LeakyReLU in a
    # Pallas kernel tiled along S (full-resolution volumes land here).
    mean = jnp.mean(x2, axis=-1, keepdims=True, dtype=jnp.float32)
    msq = jnp.mean(jnp.square(x2.astype(jnp.float32)), axis=-1, keepdims=True)
    var = jnp.maximum(msq - jnp.square(mean), 0.0)
    rstd = jax.lax.rsqrt(var + 1e-5)

    TR = R if R <= sub else sub
    TS = max(_LANE, min(S, (bud["in_blk"] // (TR * 4)) // _LANE * _LANE))
    vmem_limit = int(min(max(8 * TR * TS * 4, 32 << 20), bud["vmem_cap"]))
    out = pl.pallas_call(
        _in_norm_apply_kernel,
        out_shape=jax.ShapeDtypeStruct((R, S), dt),
        grid=(pl.cdiv(R, TR), pl.cdiv(S, TS)),
        in_specs=[
            pl.BlockSpec((TR, TS), lambda i, j: (i, j)),
            pl.BlockSpec((TR, 1), lambda i, j: (i, 0)),
            pl.BlockSpec((TR, 1), lambda i, j: (i, 0)),
        ],
        out_specs=pl.BlockSpec((TR, TS), lambda i, j: (i, j)),
        compiler_params=pltpu.CompilerParams(
            dimension_semantics=("parallel", "parallel"),
            vmem_limit_bytes=vmem_limit,
        ),
    )(x2, mean, rstd)
    return out.reshape(N, C, D, H, W)


# ----------------------------------------------------------------------------
# Conv3d / ConvTranspose3d built on the Pallas matmul
# ----------------------------------------------------------------------------

def _im2col(x, k, stride, pad, compute_dtype):
    """x: (N, Cin, D, H, W) -> A: (Cin*k^3, N*oD*oH*oW).

    K ordered (Cin outer, tap inner) to match PyTorch weight.reshape(Cout, -1).
    """
    N, Cin, D, H, W = x.shape
    x = x.astype(compute_dtype)
    xp = jnp.pad(x, ((0, 0), (0, 0), (pad, pad), (pad, pad), (pad, pad)))
    oD = (D + 2 * pad - k) // stride + 1
    oH = (H + 2 * pad - k) // stride + 1
    oW = (W + 2 * pad - k) // stride + 1

    # TODO(synk): im2col is still materialized in HBM; fusing it into the
    # matmul kernel (halo-aware / k^3-reduction tiles) is the remaining win.
    cols = []
    for kd in range(k):
        for kh in range(k):
            for kw in range(k):
                cols.append(
                    xp[:, :,
                       kd:kd + (oD - 1) * stride + 1:stride,
                       kh:kh + (oH - 1) * stride + 1:stride,
                       kw:kw + (oW - 1) * stride + 1:stride]
                )
    patches = jnp.stack(cols, axis=2)      # (N, Cin, k^3, oD, oH, oW)
    # TODO(synk): for N>1 this transpose is a full HBM shuffle of the inflated
    # tensor; it is a free reshape for the N=1 registration case.
    A = patches.transpose(1, 2, 0, 3, 4, 5).reshape(Cin * k ** 3,
                                                    N * oD * oH * oW)
    return A, (oD, oH, oW)


def conv3d(x, w, b, stride=1, pad=1, compute_dtype=jnp.bfloat16,
           out_dtype=jnp.bfloat16):
    """x: (N, Cin, D, H, W); w: (Cout, Cin, k, k, k); b: (Cout,)."""
    N, Cin = x.shape[0], x.shape[1]
    Cout, _, k, _, _ = w.shape
    A, (oD, oH, oW) = _im2col(x, k, stride, pad, compute_dtype)
    Bm = w.reshape(Cout, Cin * k ** 3)
    out = _matmul_T(Bm, A, b, compute_dtype=compute_dtype, out_dtype=out_dtype)
    return out.reshape(Cout, N, oD, oH, oW).transpose(1, 0, 2, 3, 4)


def conv_transpose3d(x, wT, b, stride=2, pad=1, compute_dtype=jnp.bfloat16,
                     out_dtype=jnp.bfloat16):
    """PyTorch ConvTranspose3d(kernel=4, stride=2, padding=1) via sub-pixel
    (phase) decomposition merged into ONE lane-dense matmul: one shared 27-tap
    (k=3, pad=1) im2col of x, one block-structured (8*Cout, Cin*27) weight."""
    N, Cin, D, H, W = x.shape
    Cout = wT.shape[1]
    k = wT.shape[2]
    assert k == 4 and stride == 2 and pad == 1

    A, _ = _im2col(x, 3, 1, 1, compute_dtype)        # (Cin*27, N*D*H*W)

    def tap_to_k(p, t):
        # phase bit p, im2col tap t in {0,1,2} -> ConvTranspose kernel index
        return ({0: 3, 1: 1} if p == 0 else {1: 2, 2: 0}).get(t, None)

    zeros = jnp.zeros((Cout, Cin), wT.dtype)
    rows = []
    for pd in range(2):
        for ph in range(2):
            for pw in range(2):
                taps = []
                for td in range(3):
                    kd = tap_to_k(pd, td)
                    for th in range(3):
                        kh = tap_to_k(ph, th)
                        for tw in range(3):
                            kw = tap_to_k(pw, tw)
                            if kd is None or kh is None or kw is None:
                                taps.append(zeros)
                            else:
                                taps.append(wT[:, :, kd, kh, kw].T)  # (Cout, Cin)
                Wp = jnp.stack(taps, axis=-1)        # (Cout, Cin, 27)
                rows.append(Wp.reshape(Cout, Cin * 27))
    Bm = jnp.concatenate(rows, axis=0)               # (8*Cout, Cin*27)
    bias8 = jnp.tile(b, 8)

    y = _matmul_T(Bm, A, bias8, compute_dtype=compute_dtype,
                  out_dtype=out_dtype)               # (8*Cout, N*D*H*W)
    y = y.reshape(2, 2, 2, Cout, N, D, H, W)
    # out[n, c, 2q+pd, 2r+ph, 2s+pw] = y[pd, ph, pw, c, n, q, r, s]
    # TODO(synk): fold this interleave into the matmul output index_map to
    # avoid a full-output HBM shuffle.
    y = y.transpose(4, 3, 5, 0, 6, 1, 7, 2)
    return y.reshape(N, Cout, 2 * D, 2 * H, 2 * W)


# ----------------------------------------------------------------------------
# Spatial transformer (grid_sample, align_corners=True), scaling-and-squaring
# integration, trilinear upsampling  (plain JAX glue)
# ----------------------------------------------------------------------------

def warp(src, flow):
    """src: (N, C, D, H, W); flow: (N, 3, D, H, W) in voxel displacements."""
    # TODO(synk): data-dependent gather; kept in plain JAX (no clean Pallas path).
    N, C, D, H, W = src.shape
    gd, gh, gw = jnp.meshgrid(
        jnp.arange(D, dtype=jnp.float32),
        jnp.arange(H, dtype=jnp.float32),
        jnp.arange(W, dtype=jnp.float32),
        indexing="ij",
    )
    pd = gd[None] + flow[:, 0]
    ph = gh[None] + flow[:, 1]
    pw = gw[None] + flow[:, 2]

    d0 = jnp.floor(pd); d1 = d0 + 1.0
    h0 = jnp.floor(ph); h1 = h0 + 1.0
    w0 = jnp.floor(pw); w1 = w0 + 1.0
    wd1 = pd - d0; wd0 = 1.0 - wd1
    wh1 = ph - h0; wh0 = 1.0 - wh1
    ww1 = pw - w0; ww0 = 1.0 - ww1

    src_flat = src.reshape(N, C, D * H * W)

    def gather(di, hi, wi):
        valid = ((di >= 0) & (di <= D - 1) & (hi >= 0) & (hi <= H - 1)
                 & (wi >= 0) & (wi <= W - 1))
        dii = jnp.clip(di, 0, D - 1).astype(jnp.int32)
        hii = jnp.clip(hi, 0, H - 1).astype(jnp.int32)
        wii = jnp.clip(wi, 0, W - 1).astype(jnp.int32)
        flat = (dii * H + hii) * W + wii  # (N, D, H, W)

        def g_one(sf, ff):
            return jnp.take(sf, ff.reshape(-1), axis=1).reshape(C, D, H, W)

        vals = jax.vmap(g_one)(src_flat, flat)
        return vals * valid[:, None].astype(src.dtype)

    out = (gather(d0, h0, w0) * (wd0 * wh0 * ww0)[:, None]
           + gather(d0, h0, w1) * (wd0 * wh0 * ww1)[:, None]
           + gather(d0, h1, w0) * (wd0 * wh1 * ww0)[:, None]
           + gather(d0, h1, w1) * (wd0 * wh1 * ww1)[:, None]
           + gather(d1, h0, w0) * (wd1 * wh0 * ww0)[:, None]
           + gather(d1, h0, w1) * (wd1 * wh0 * ww1)[:, None]
           + gather(d1, h1, w0) * (wd1 * wh1 * ww0)[:, None]
           + gather(d1, h1, w1) * (wd1 * wh1 * ww1)[:, None])
    return out


def vecint(vec, nsteps=7):
    vec = vec * (1.0 / (2 ** nsteps))
    for _ in range(nsteps):
        vec = vec + warp(vec, vec)
    return vec


def upsample_trilinear_x2(x):
    """nn.Upsample(scale_factor=2, mode='trilinear', align_corners=True)."""
    # TODO(synk): gather-based resample kept in plain JAX.
    def up_axis(a, axis):
        s = a.shape[axis]
        so = 2 * s
        if s == 1:
            return jnp.repeat(a, 2, axis=axis)
        pos = jnp.arange(so, dtype=jnp.float32) * (s - 1) / (so - 1)
        lo = jnp.floor(pos).astype(jnp.int32)
        hi = jnp.minimum(lo + 1, s - 1)
        wgt = pos - lo.astype(jnp.float32)
        a_lo = jnp.take(a, lo, axis=axis)
        a_hi = jnp.take(a, hi, axis=axis)
        shape = [1] * a.ndim
        shape[axis] = so
        wgt = wgt.reshape(shape)
        return a_lo * (1.0 - wgt) + a_hi * wgt

    x = up_axis(x, 2)
    x = up_axis(x, 3)
    x = up_axis(x, 4)
    return x


# ----------------------------------------------------------------------------
# Network building blocks
# ----------------------------------------------------------------------------

def conv_ins_block(x, wb, stride=1, pad=1):
    w, b = wb
    return instnorm_lrelu(conv3d(x, w, b, stride=stride, pad=pad))


def res_block(x, wb):
    w, b = wb
    h = instnorm_lrelu(x)
    h = conv3d(h, w, b, stride=1, pad=1)
    return instnorm_lrelu(h + x)


def encoder_fwd(p, x):
    out0 = conv_ins_block(x, p["conv0"])
    h = conv3d(out0, *p["conv1"], stride=2, pad=1)
    out1 = res_block(h, p["res1"])
    h = conv3d(out1, *p["conv2"], stride=2, pad=1)
    out2 = res_block(h, p["res2"])
    h = conv3d(out2, *p["conv3"], stride=2, pad=1)
    out3 = res_block(h, p["res3"])
    return out0, out1, out2, out3


def cconv_block(x, params):
    for wb in params:
        x = conv_ins_block(x, wb)
    return x


def cconv(float_fm, fixed_fm, d_fm, params):
    return cconv_block(jnp.concatenate([float_fm, fixed_fm, d_fm], axis=1), params)


def upconv_block(x, wb):
    w, b = wb
    return instnorm_lrelu(conv_transpose3d(x, w, b, stride=2, pad=1))


def defconv(x, wb):
    # flow-field convs (weights init std=1e-5): keep f32 end-to-end
    w, b = wb
    return conv3d(x, w, b, stride=1, pad=1,
                  compute_dtype=jnp.float32, out_dtype=jnp.float32)


# ----------------------------------------------------------------------------
# Parameter init (deterministic, shapes from RDP.__init__)
# ----------------------------------------------------------------------------

def init_params(key, c=4, in_channel=1):
    keys = iter(jax.random.split(key, 64))

    def conv(cout, cin, k=3, std=None):
        kk = next(keys)
        if std is None:
            std = (cin * k ** 3) ** -0.5
        w = jax.random.normal(kk, (cout, cin, k, k, k), jnp.float32) * std
        b = jnp.zeros((cout,), jnp.float32)
        return (w, b)

    def convT(cin, cout, k=4):
        kk = next(keys)
        std = (cin * k ** 3) ** -0.5
        w = jax.random.normal(kk, (cin, cout, k, k, k), jnp.float32) * std
        b = jnp.zeros((cout,), jnp.float32)
        return (w, b)

    def encoder():
        return {
            "conv0": conv(c, in_channel),
            "conv1": conv(2 * c, c),
            "res1": conv(2 * c, 2 * c),
            "conv2": conv(4 * c, 2 * c),
            "res2": conv(4 * c, 4 * c),
            "conv3": conv(8 * c, 4 * c),
            "res3": conv(8 * c, 8 * c),
        }

    P = {}
    P["enc_m"] = encoder()
    P["enc_f"] = encoder()
    P["cconv_4"] = [conv(8 * c, 16 * c), conv(8 * c, 8 * c)]
    P["defconv4"] = conv(3, 8 * c, std=1e-5)
    P["dconv4"] = [conv(8 * c, 24 * c), conv(8 * c, 8 * c)]
    P["upconv3"] = convT(8 * c, 4 * c)
    P["cconv_3"] = [conv(12 * c, 12 * c), conv(12 * c, 12 * c)]
    P["defconv3"] = conv(3, 12 * c, std=1e-5)
    P["dconv3"] = conv(4 * c, 12 * c)
    P["upconv2"] = convT(12 * c, 2 * c)
    P["cconv_2"] = [conv(6 * c, 6 * c), conv(6 * c, 6 * c)]
    P["defconv2"] = conv(3, 6 * c, std=1e-5)
    P["dconv2"] = conv(2 * c, 6 * c)
    P["upconv1"] = convT(6 * c, c)
    P["cconv_1"] = [conv(3 * c, 3 * c), conv(3 * c, 3 * c)]
    P["defconv1"] = conv(3, 3 * c, std=1e-5)
    return P


# ----------------------------------------------------------------------------
# RDP forward
# ----------------------------------------------------------------------------

def rdp_forward(P, moving, fixed):
    M1, M2, M3, M4 = encoder_fwd(P["enc_m"], moving)
    F1, F2, F3, F4 = encoder_fwd(P["enc_f"], fixed)

    # level /8
    C4 = jnp.concatenate([F4, M4], axis=1)
    C4 = cconv_block(C4, P["cconv_4"])
    flow = defconv(C4, P["defconv4"])
    flow = vecint(flow)
    warped = warp(M4, flow)
    C4 = cconv_block(jnp.concatenate([F4, warped, C4], axis=1), P["dconv4"])
    v = defconv(C4, P["defconv4"])
    w = vecint(v)

    # level /4
    D3 = upconv_block(C4, P["upconv3"])
    flow = upsample_trilinear_x2(2.0 * (warp(flow, w) + w))
    warped = warp(M3, flow)
    C3 = cconv(F3, warped, D3, P["cconv_3"])
    v = defconv(C3, P["defconv3"])
    w = vecint(v)
    flow = warp(flow, w) + w
    warped = warp(M3, flow)
    D3 = conv_ins_block(C3, P["dconv3"])
    C3 = cconv(F3, warped, D3, P["cconv_3"])
    v = defconv(C3, P["defconv3"])
    w = vecint(v)

    # level /2
    D2 = upconv_block(C3, P["upconv2"])
    flow = upsample_trilinear_x2(2.0 * (warp(flow, w) + w))
    warped = warp(M2, flow)
    C2 = cconv(F2, warped, D2, P["cconv_2"])
    v = defconv(C2, P["defconv2"])
    w = vecint(v)
    flow = warp(flow, w) + w
    warped = warp(M2, flow)
    D2 = conv_ins_block(C2, P["dconv2"])
    C2 = cconv(F2, warped, D2, P["cconv_2"])
    v = defconv(C2, P["defconv2"])
    w = vecint(v)
    flow = warp(flow, w) + w
    warped = warp(M2, flow)
    D2 = conv_ins_block(C2, P["dconv2"])
    C2 = cconv(F2, warped, D2, P["cconv_2"])
    v = defconv(C2, P["defconv2"])
    w = vecint(v)

    # level /1
    D1 = upconv_block(C2, P["upconv1"])
    flow = upsample_trilinear_x2(2.0 * (warp(flow, w) + w))
    warped = warp(M1, flow)
    C1 = cconv(F1, warped, D1, P["cconv_1"])
    v = defconv(C1, P["defconv1"])
    w = vecint(v)
    flow = warp(flow, w) + w
    y_moved = warp(moving, flow)
    return y_moved, flow


# ----------------------------------------------------------------------------

if __name__ == "__main__":
    key = jax.random.PRNGKey(0)
    k_m, k_f, k_p = jax.random.split(key, 3)

    inshape = (16, 16, 16)   # must be divisible by 8 (3 stride-2 levels)
    channels = 4
    moving = jax.random.normal(k_m, (1, 1) + inshape, jnp.float32)
    fixed = jax.random.normal(k_f, (1, 1) + inshape, jnp.float32)

    params = init_params(k_p, c=channels, in_channel=1)

    y_moved, flow = rdp_forward(params, moving, fixed)
    jax.block_until_ready((y_moved, flow))

    assert y_moved.shape == (1, 1) + inshape
    assert flow.shape == (1, 3) + inshape
    assert bool(jnp.all(jnp.isfinite(y_moved))) and bool(jnp.all(jnp.isfinite(flow)))
    print("KERNEL_OK")
</pallas_src>

<mosaic_0001>
module attributes {stable_mosaic.version = 11 : i64} {
  func.func @_matmul_bias_kernel(%arg0: i32, %arg1: memref<24x648xbf16, #tpu.memory_space<vmem>>, %arg2: memref<648x256xbf16, #tpu.memory_space<vmem>>, %arg3: memref<24x1xf32, #tpu.memory_space<vmem>>, %arg4: memref<24x256xbf16, #tpu.memory_space<vmem>>) attributes {dimension_semantics = [#tpu.dimension_semantics<parallel>], iteration_bounds = array<i64: 2>, scalar_prefetch = 0 : i64, scratch_operands = 0 : i64, tpu.core_type = #tpu.core_type<tc>, window_params = [{pipeline_mode = #tpu.pipeline_mode<synchronous>, transform_indices = @transform_0, window_bounds = array<i64: 24, 648>}, {transform_indices = @transform_1, window_bounds = array<i64: 648, 256>}, {pipeline_mode = #tpu.pipeline_mode<synchronous>, transform_indices = @transform_2, window_bounds = array<i64: 24, 1>}, {transform_indices = @transform_3, window_bounds = array<i64: 24, 256>}]} {
    %c0 = arith.constant 0 : index
    %c0_0 = arith.constant 0 : index
    %0 = vector.load %arg1[%c0, %c0_0] : memref<24x648xbf16, #tpu.memory_space<vmem>>, vector<24x648xbf16>
    %c0_1 = arith.constant 0 : index
    %c0_2 = arith.constant 0 : index
    %1 = vector.load %arg2[%c0_1, %c0_2] : memref<648x256xbf16, #tpu.memory_space<vmem>>, vector<648x256xbf16>
    %cst = arith.constant dense<0.000000e+00> : vector<24x256xf32>
    %2 = tpu.matmul %0, %1, %cst {dimension_numbers = #tpu.dot_dimension_numbers<[1], [0], [0], [1], [0, 0, 1, 1], [], []>} : vector<24x648xbf16>, vector<648x256xbf16>, vector<24x256xf32> -> vector<24x256xf32>
    %c0_3 = arith.constant 0 : index
    %c0_4 = arith.constant 0 : index
    %3 = vector.load %arg3[%c0_3, %c0_4] : memref<24x1xf32, #tpu.memory_space<vmem>>, vector<24x1xf32>
    %4 = vector.broadcast %3 : vector<24x1xf32> to vector<24x256xf32>
    %5 = arith.addf %2, %4 : vector<24x256xf32>
    %6 = arith.truncf %5 : vector<24x256xf32> to vector<24x256xbf16>
    %c0_5 = arith.constant 0 : index
    %c0_6 = arith.constant 0 : index
    %7 = vector.load %arg4[%c0_5, %c0_6] : memref<24x256xbf16, #tpu.memory_space<vmem>>, vector<24x256xbf16>
    tpu.vector_store %arg4[%c0_5, %c0_6], %6 {strides = array<i32>} : memref<24x256xbf16, #tpu.memory_space<vmem>>, vector<24x256xbf16>,
    return
  }
  func.func @transform_0(%arg0: i32) -> (i32, i32) {
    %c0_i32 = arith.constant 0 : i32
    %c0_i32_0 = arith.constant 0 : i32
    %c0_i32_1 = arith.constant 0 : i32
    return %c0_i32, %c0_i32_0 : i32, i32
  }
  func.func @transform_1(%arg0: i32) -> (i32, i32) {
    %c0_i32 = arith.constant 0 : i32
    %c0_i32_0 = arith.constant 0 : i32
    return %c0_i32, %arg0 : i32, i32
  }
  func.func @transform_2(%arg0: i32) -> (i32, i32) {
    %c0_i32 = arith.constant 0 : i32
    %c0_i32_0 = arith.constant 0 : i32
    %c0_i32_1 = arith.constant 0 : i32
    return %c0_i32, %c0_i32_0 : i32, i32
  }
  func.func @transform_3(%arg0: i32) -> (i32, i32) {
    %c0_i32 = arith.constant 0 : i32
    %c0_i32_0 = arith.constant 0 : i32
    return %c0_i32, %arg0 : i32, i32
  }
}

</mosaic_0001>

<llo_original>
// kernel: tpu_custom_call.1
$region0: #{tpu_custom_call.1}
  #allocation0 [shape = 'u32[]', space=smem, size = 0x4, offset = 0x4, fixed_abs, tag = 'smem constant byte address 0x4 - core index']
  #allocation1 [shape = 'u32[72,128]{1,0:T(1,128)}', space=vmem, size = 0x9000, scoped, tag = 'internal scratch']
  %s0 = inlined_call_operand.hbm [shape: bf16[24,648], index: 0, kind: input, shape index: {}]
  %s1 = inlined_call_operand.hbm [shape: bf16[648,512], index: 1, kind: input, shape index: {}]
  %s2 = inlined_call_operand.vmem [shape: f32[24,1], index: 2, kind: input, shape index: {}]
  %s3 = inlined_call_operand.hbm [shape: bf16[24,512], index: 3, kind: output, shape index: {}]
  %s4 = sld [smem:[#allocation0]]
  $region53: #{tpu_custom_call.1} parent=0
    _
  %s6 = ssub.s32 1, %s4
  %s7 = scalar_select 0, %s6, %s4
  $region1: #{tpu_custom_call.1} parent=0
    #allocation2 [shape = 'u8[36864]{0}', space=vmem, size = 0x9000, scoped, tag = 'input window, operand 0, single buffered']
    #allocation3 [shape = 's32[2]{0}', space=sflag, size = 0x8, scoped, tag = 'scoped memory for tpu_custom_call.1']
    #allocation4 [shape = 's32[2]{0}', space=sflag, size = 0x8, scoped, tag = 'scoped memory for tpu_custom_call.1']
    #allocation5 [shape = 'u8[663552]{0}', space=vmem, size = 0xa2000, scoped, tag = 'input window, operand 1']
    #allocation6 [shape = 's32[2]{0}', space=sflag, size = 0x8, scoped, tag = 'scoped memory for tpu_custom_call.1']
    #allocation7 [shape = 'u8[24576]{0}', space=vmem, size = 0x6000, scoped, tag = 'output window, operand 0']
    %8 = vsyncpa [#allocation3], 0
    %9 = vsyncpa [#allocation6], 0
    %s10 = scalar_lea.sflag [#allocation6], 1
    %11 = vsyncpa %s10, 0
    %12 = vsyncpa [#allocation4], 0
    %s13 = scalar_lea.sflag [#allocation4], 1
    %14 = vsyncpa %s13, 0
    loop: start=0, step=1, limit=4
    $region2: #{tpu_custom_call.1} parent=1 // loop_pre_header
      _
    $region3: #{tpu_custom_call.1} parent=1 // loop_header
      %s16 = sphi 0, %s20
      %p17 = scmp.ge.s32.totalorder %s16, 4
      %s24 = sphi 0, %s24
      %s26 = sphi 0, %s24
      %s27 = sphi 0, %s26
      %s41 = sphi 0, %s27
      %s47 = sphi 0, %s49
      %s50 = sphi 0, %s47
      %s51 = sphi 0, %s50
      %s67 = sphi 0, %s51
      %s71 = sphi 0, %s71
      %s73 = sphi 0, %s71
      %s74 = sphi 0, %s73
      %s88 = sphi 0, %s74
      %s94 = sphi 0, %s96
      %s97 = sphi 0, %s94
      %s98 = sphi 0, %s97
      %s114 = sphi 0, %s98
    $region4: #{tpu_custom_call.1} parent=1 // loop_header_branch
      %19 = sbr.rel (%p17) target = $region8
    $region5: #{tpu_custom_call.1} parent=1 // loop_body
      %s21 = ssub.s32 %s16, 1
      %s22 = ssub.s32 %s16, 2
      %s23 = sadd.s32 %s16, 1
      %s25 = sadd.s32 %s24, 1
      %p28 = scmp.eq.s32.totalorder %s16, 1
      %p29 = scmp.ne.s32.totalorder %s24, %s26
      %p30 = scmp.eq.s32.totalorder %s16, 0
      %p31 = por %p29, %p30
      %p32 = scmp.ne.s32.totalorder %s24, %s26
      %p33 = scmp.eq.s32.totalorder %s21, 1
      %p34 = por %p32, %p33
      %p35 = scmp.ne.s32.totalorder %s26, %s27
      %p36 = scmp.eq.s32.totalorder %s21, 0
      %p37 = por %p35, %p36
      %p38 = scmp.ne.s32.totalorder %s26, %s27
      %p39 = scmp.eq.s32.totalorder %s22, 1
      %p40 = por %p38, %p39
      %p42 = scmp.ne.s32.totalorder %s27, %s41
      %p43 = scmp.eq.s32.totalorder %s22, 0
      %p44 = por %p42, %p43
      %s45 = ssub.s32 %s16, %s23
      %p46 = scmp.eq.s32.totalorder %s45, 0
      %s48 = sadd.s32 %s47, 1
      %s49 = scalar_select %p46, %s47, %s48
      %p52 = pneg %p46
      %p53 = scmp.eq.s32.totalorder %s16, 1
      %p54 = por %p52, %p53
      %p55 = scmp.ne.s32.totalorder %s47, %s50
      %p56 = scmp.eq.s32.totalorder %s16, 0
      %p57 = por %p55, %p56
      %p58 = scmp.ne.s32.totalorder %s47, %s50
      %p59 = scmp.eq.s32.totalorder %s21, 1
      %p60 = por %p58, %p59
      %p61 = scmp.ne.s32.totalorder %s50, %s51
      %p62 = scmp.eq.s32.totalorder %s21, 0
      %p63 = por %p61, %p62
      %p64 = scmp.ne.s32.totalorder %s50, %s51
      %p65 = scmp.eq.s32.totalorder %s22, 1
      %p66 = por %p64, %p65
      %p68 = scmp.ne.s32.totalorder %s51, %s67
      %p69 = scmp.eq.s32.totalorder %s22, 0
      %p70 = por %p68, %p69
      %s72 = sadd.s32 %s71, 1
      %p75 = scmp.eq.s32.totalorder %s16, 1
      %p76 = scmp.ne.s32.totalorder %s71, %s73
      %p77 = scmp.eq.s32.totalorder %s16, 0
      %p78 = por %p76, %p77
      %p79 = scmp.ne.s32.totalorder %s71, %s73
      %p80 = scmp.eq.s32.totalorder %s21, 1
      %p81 = por %p79, %p80
      %p82 = scmp.ne.s32.totalorder %s73, %s74
      %p83 = scmp.eq.s32.totalorder %s21, 0
      %p84 = por %p82, %p83
      %p85 = scmp.ne.s32.totalorder %s73, %s74
      %p86 = scmp.eq.s32.totalorder %s22, 1
      %p87 = por %p85, %p86
      %p89 = scmp.ne.s32.totalorder %s74, %s88
      %p90 = scmp.eq.s32.totalorder %s22, 0
      %p91 = por %p89, %p90
      %s92 = ssub.s32 %s16, %s23
      %p93 = scmp.eq.s32.totalorder %s92, 0
      %s95 = sadd.s32 %s94, 1
      %s96 = scalar_select %p93, %s94, %s95
      %p99 = pneg %p93
      %p100 = scmp.eq.s32.totalorder %s16, 1
      %p101 = por %p99, %p100
      %p102 = scmp.ne.s32.totalorder %s94, %s97
      %p103 = scmp.eq.s32.totalorder %s16, 0
      %p104 = por %p102, %p103
      %p105 = scmp.ne.s32.totalorder %s94, %s97
      %p106 = scmp.eq.s32.totalorder %s21, 1
      %p107 = por %p105, %p106
      %p108 = scmp.ne.s32.totalorder %s97, %s98
      %p109 = scmp.eq.s32.totalorder %s21, 0
      %p110 = por %p108, %p109
      %p111 = scmp.ne.s32.totalorder %s97, %s98
      %p112 = scmp.eq.s32.totalorder %s22, 1
      %p113 = por %p111, %p112
      %p115 = scmp.ne.s32.totalorder %s98, %s114
      %p116 = scmp.eq.s32.totalorder %s22, 0
      %p117 = por %p115, %p116
      %p118 = scmp.le.s32.totalorder 1, %s16
      %p119 = scmp.lt.s32.totalorder %s16, 3
      %p120 = pnand %p118, %p119
      %p121 = pneg %p120
      // Predicated region
      $region9: #{tpu_custom_call.1} parent=5 // pred_check
        _
      $region10: #{tpu_custom_call.1} parent=5 // pred_check_branch
        %123 = sbr.rel (%p120) target = $region12
      $region11: #{tpu_custom_call.1} parent=5 // pred_region
        %s124 = ssub.s32 %s16, 1
        // Predicated region
        $region13: #{tpu_custom_call.1} parent=11 // pred_check
          %p125 = pneg %p37
        $region14: #{tpu_custom_call.1} parent=11 // pred_check_branch
          %127 = sbr.rel (%p125) target = $region16
        $region15: #{tpu_custom_call.1} parent=11 // pred_region
          %129 = vsyncadd [#allocation3], 0
          %s130 = sshll.u32 %s0, 4
          %s131 = int_to_ptr.hbm [resolvable:$true] %s130
          %s132 = sshll.u32 [#allocation2], 4
          %s133 = int_to_ptr.vmem [resolvable:$true] %s132
          %138 = dma.hbm_to_vmem [thread:$0]  %s131, 1152, %s133, [#allocation3], 384, 384, 24
        $region16: #{tpu_custom_call.1} parent=11 // pred_fallthru
          _
        // Predicated region
        $region17: #{tpu_custom_call.1} parent=11 // pred_check
          %p139 = pneg %p84
        $region18: #{tpu_custom_call.1} parent=11 // pred_check_branch
          %141 = sbr.rel (%p139) target = $region20
        $region19: #{tpu_custom_call.1} parent=11 // pred_region
          _
        $region20: #{tpu_custom_call.1} parent=11 // pred_fallthru
          _
      $region12: #{tpu_custom_call.1} parent=5 // pred_fallthru
        _
      %p142 = scmp.lt.s32.totalorder %s16, 2
      // Predicated region
      $region21: #{tpu_custom_call.1} parent=5 // pred_check
        %p143 = pneg %p142
      $region22: #{tpu_custom_call.1} parent=5 // pred_check_branch
        %145 = sbr.rel (%p143) target = $region24
      $region23: #{tpu_custom_call.1} parent=5 // pred_region
        // Predicated region
        $region25: #{tpu_custom_call.1} parent=23 // pred_check
          %p146 = pneg %p57
        $region26: #{tpu_custom_call.1} parent=23 // pred_check_branch
          %148 = sbr.rel (%p146) target = $region28
        $region27: #{tpu_custom_call.1} parent=23 // pred_region
          %s149 = sand.u32 %s47, 1
          %s150 = scalar_lea.sflag [#allocation6], %s149
          %s151 = sand.u32 %s47, 1
          %s152 = smul.addr %s151, 648
          %s153 = scalar_lea.vmem [#allocation5], %s152
          %s154 = smul.u32 2, %s16
          %156 = vsyncadd %s150, 0
          %s157 = smul.addr %s154, 4
          %s158 = scalar_lea.hbm %s1, %s157
          %s159 = sshll.u32 %s158, 4
          %s160 = int_to_ptr.hbm [resolvable:$true] %s159
          %s161 = sshll.u32 %s153, 4
          %s162 = int_to_ptr.vmem [resolvable:$true] %s161
          %167 = dma.hbm_to_vmem [thread:$0]  %s160, 10368, %s162, %s150, 256, 128, 8
        $region28: #{tpu_custom_call.1} parent=23 // pred_fallthru
          _
      $region24: #{tpu_custom_call.1} parent=5 // pred_fallthru
        _
      %p168 = scmp.le.s32.totalorder 1, %s16
      %p169 = scmp.lt.s32.totalorder %s16, 3
      %p170 = pnand %p168, %p169
      %p171 = pneg %p170
      // Predicated region
      $region29: #{tpu_custom_call.1} parent=5 // pred_check
        _
      $region30: #{tpu_custom_call.1} parent=5 // pred_check_branch
        %173 = sbr.rel (%p170) target = $region32
      $region31: #{tpu_custom_call.1} parent=5 // pred_region
        %s174 = ssub.s32 %s16, 1
        // Predicated region
        $region33: #{tpu_custom_call.1} parent=31 // pred_check
          %p175 = pneg %p37
        $region34: #{tpu_custom_call.1} parent=31 // pred_check_branch
          %177 = sbr.rel (%p175) target = $region36
        $region35: #{tpu_custom_call.1} parent=31 // pred_region
          %179 = dma.done [#allocation3], 1152
        $region36: #{tpu_custom_call.1} parent=31 // pred_fallthru
          _
        %s180 = sand.u32 %s50, 1
        %s181 = scalar_lea.sflag [#allocation6], %s180
        %s182 = sand.u32 %s50, 1
        %s183 = smul.addr %s182, 648
        %s184 = scalar_lea.vmem [#allocation5], %s183
        // Predicated region
        $region37: #{tpu_custom_call.1} parent=31 // pred_check
          %p185 = pneg %p63
        $region38: #{tpu_custom_call.1} parent=31 // pred_check_branch
          %187 = sbr.rel (%p185) target = $region40
        $region39: #{tpu_custom_call.1} parent=31 // pred_region
          %189 = dma.done %s181, 10368
        $region40: #{tpu_custom_call.1} parent=31 // pred_fallthru
          _
        %p190 = pneg %p37
        %p191 = pneg %p34
        %s192 = sand.u32 %s50, 1
        %s193 = scalar_lea.sflag [#allocation6], %s192
        %s194 = sand.u32 %s50, 1
        %s195 = smul.addr %s194, 648
        %s196 = scalar_lea.vmem [#allocation5], %s195
        %p197 = pneg %p63
        %p198 = pneg %p60
        %p199 = pneg %p84
        %p200 = pneg %p81
        %p201 = pneg %p110
        %p202 = pneg %p107
        %s203 = sand.u32 %s97, 1
        %s204 = scalar_lea.sflag [#allocation4], %s203
        %s205 = sand.u32 %s97, 1
        %s206 = smul.addr %s205, 24
        %s207 = scalar_lea.vmem [#allocation7], %s206
        %s208 = smul.u32 2, %s21
        %s209 = smul.u32 2, %s21
        %v211 = vld [vmem:[#allocation2] sm:$0xff]
        %v212 = vld [vmem:[#allocation2 + $0x8] sm:$0xff]
        %v213 = vld [vmem:[#allocation2 + $0x10] sm:$0xff]
        %v214 = vld [vmem:[#allocation2 + $0x18] sm:$0xff]
        %v215 = vld [vmem:[#allocation2 + $0x20] sm:$0xff]
        %v216 = vld [vmem:[#allocation2 + $0x28] sm:$0xff]
        %v217 = vld [vmem:[#allocation2 + $0x30] sm:$0xff]
        %v218 = vld [vmem:[#allocation2 + $0x38] sm:$0xff]
        %v219 = vld [vmem:[#allocation2 + $0x40] sm:$0xff]
        %v220 = vld [vmem:[%s184] sm:$0xff]
        %v221 = vld [vmem:[%s184 + $0x8] sm:$0xff]
        %v222 = vld [vmem:[%s184 + $0x10] sm:$0xff]
        %v223 = vld [vmem:[%s184 + $0x18] sm:$0xff]
        %v224 = vld [vmem:[%s184 + $0x20] sm:$0xff]
        %v225 = vld [vmem:[%s184 + $0x28] sm:$0xff]
        %v226 = vld [vmem:[%s184 + $0x30] sm:$0xff]
        %v227 = vld [vmem:[%s184 + $0x38] sm:$0xff]
        %v228 = vld [vmem:[%s184 + $0x40] sm:$0xff]
        %v229 = vld [vmem:[%s184 + $0x48] sm:$0xff]
        %v230 = vld [vmem:[%s184 + $0x50] sm:$0xff]
        %v231 = vld [vmem:[%s184 + $0x58] sm:$0xff]
        %v232 = vld [vmem:[%s184 + $0x60] sm:$0xff]
        %v233 = vld [vmem:[%s184 + $0x68] sm:$0xff]
        %v234 = vld [vmem:[%s184 + $0x70] sm:$0xff]
        %v235 = vld [vmem:[%s184 + $0x78] sm:$0xff]
        %v236 = vld [vmem:[%s184 + $0x80] sm:$0xff]
        %v237 = vld [vmem:[%s184 + $0x88] sm:$0xff]
        %v238 = vld [vmem:[%s184 + $0x90] sm:$0xff]
        %v239 = vld [vmem:[%s184 + $0x98] sm:$0xff]
        %v240 = vld [vmem:[%s184 + $0xa0] sm:$0xff]
        %v241 = vld [vmem:[%s184 + $0xa8] sm:$0xff]
        %v242 = vld [vmem:[%s184 + $0xb0] sm:$0xff]
        %v243 = vld [vmem:[%s184 + $0xb8] sm:$0xff]
        %v244 = vld [vmem:[%s184 + $0xc0] sm:$0xff]
        %v245 = vld [vmem:[%s184 + $0xc8] sm:$0xff]
        %v246 = vld [vmem:[%s184 + $0xd0] sm:$0xff]
        %v247 = vld [vmem:[%s184 + $0xd8] sm:$0xff]
        %v248 = vld [vmem:[%s184 + $0xe0] sm:$0xff]
        %v249 = vld [vmem:[%s184 + $0xe8] sm:$0xff]
        %v250 = vld [vmem:[%s184 + $0xf0] sm:$0xff]
        %v251 = vld [vmem:[%s184 + $0xf8] sm:$0xff]
        %v252 = vld [vmem:[%s184 + $0x100] sm:$0xff]
        %v253 = vld [vmem:[%s184 + $0x108] sm:$0xff]
        %v254 = vld [vmem:[%s184 + $0x110] sm:$0xff]
        %v255 = vld [vmem:[%s184 + $0x118] sm:$0xff]
        %v256 = vld [vmem:[%s184 + $0x120] sm:$0xff]
        %v257 = vld [vmem:[%s184 + $0x128] sm:$0xff]
        %v258 = vld [vmem:[%s184 + $0x130] sm:$0xff]
        %v259 = vld [vmem:[%s184 + $0x138] sm:$0xff]
        %v260 = vld [vmem:[%s184 + $0x140] sm:$0xff]
        %v261 = vld [vmem:[%s184 + $0x148] sm:$0xff]
        %v262 = vld [vmem:[%s184 + $0x150] sm:$0xff]
        %v263 = vld [vmem:[%s184 + $0x158] sm:$0xff]
        %v264 = vld [vmem:[%s184 + $0x160] sm:$0xff]
        %v265 = vld [vmem:[%s184 + $0x168] sm:$0xff]
        %v266 = vld [vmem:[%s184 + $0x170] sm:$0xff]
        %v267 = vld [vmem:[%s184 + $0x178] sm:$0xff]
        %v268 = vld [vmem:[%s184 + $0x180] sm:$0xff]
        %v269 = vld [vmem:[%s184 + $0x188] sm:$0xff]
        %v270 = vld [vmem:[%s184 + $0x190] sm:$0xff]
        %v271 = vld [vmem:[%s184 + $0x198] sm:$0xff]
        %v272 = vld [vmem:[%s184 + $0x1a0] sm:$0xff]
        %v273 = vld [vmem:[%s184 + $0x1a8] sm:$0xff]
        %v274 = vld [vmem:[%s184 + $0x1b0] sm:$0xff]
        %v275 = vld [vmem:[%s184 + $0x1b8] sm:$0xff]
        %v276 = vld [vmem:[%s184 + $0x1c0] sm:$0xff]
        %v277 = vld [vmem:[%s184 + $0x1c8] sm:$0xff]
        %v278 = vld [vmem:[%s184 + $0x1d0] sm:$0xff]
        %v279 = vld [vmem:[%s184 + $0x1d8] sm:$0xff]
        %v280 = vld [vmem:[%s184 + $0x1e0] sm:$0xff]
        %v281 = vld [vmem:[%s184 + $0x1e8] sm:$0xff]
        %v282 = vld [vmem:[%s184 + $0x1f0] sm:$0xff]
        %v283 = vld [vmem:[%s184 + $0x1f8] sm:$0xff]
        %v284 = vld [vmem:[%s184 + $0x200] sm:$0xff]
        %v285 = vld [vmem:[%s184 + $0x208] sm:$0xff]
        %v286 = vld [vmem:[%s184 + $0x210] sm:$0xff]
        %v287 = vld [vmem:[%s184 + $0x218] sm:$0xff]
        %v288 = vld [vmem:[%s184 + $0x220] sm:$0xff]
        %v289 = vld [vmem:[%s184 + $0x228] sm:$0xff]
        %v290 = vld [vmem:[%s184 + $0x230] sm:$0xff]
        %v291 = vld [vmem:[%s184 + $0x238] sm:$0xff]
        %v292 = vld [vmem:[%s184 + $0x240] sm:$0xff]
        %v293 = vld [vmem:[%s184 + $0x248] sm:$0xff]
        %v294 = vld [vmem:[%s184 + $0x250] sm:$0xff]
        %v295 = vld [vmem:[%s184 + $0x258] sm:$0xff]
        %v296 = vld [vmem:[%s184 + $0x260] sm:$0xff]
        %v297 = vld [vmem:[%s184 + $0x268] sm:$0xff]
        %v298 = vld [vmem:[%s184 + $0x270] sm:$0xff]
        %v299 = vld [vmem:[%s184 + $0x278] sm:$0xff]
        %v300 = vld [vmem:[%s184 + $0x280] sm:$0xff]
        %v301 = vld [vmem:[%s2] sm:$0xff]
        %v302 = vld [vmem:[%s2 + $0x8] sm:$0xff]
        %v303 = vld [vmem:[%s2 + $0x10] sm:$0xff]
        %305 = vset.pattern.permute.xlu0 0
        %306 = vperm.xlu0 %305, %v301
        %v307 = vpop.permute.xlu0 %306
        %310 = vset.pattern.permute.xlu0 0
        %311 = vperm.xlu0 %310, %v302
        %v312 = vpop.permute.xlu0 %311
        %315 = vset.pattern.permute.xlu0 0
        %316 = vperm.xlu0 %315, %v303
        %v317 = vpop.permute.xlu0 %316
        %v328 = vunpack.c.l.b16 %v211
        %v329 = vunpack.c.h.b16 %v211
        %v330 = vunpack.c.l.b16 %v212
        %v331 = vunpack.c.h.b16 %v212
        %v332 = vunpack.c.l.b16 %v213
        %v333 = vunpack.c.h.b16 %v213
        %v334 = vunpack.c.l.b16 %v214
        %v335 = vunpack.c.h.b16 %v214
        %v336 = vunpack.c.l.b16 %v215
        %v337 = vunpack.c.h.b16 %v215
        %v338 = vunpack.c.l.b16 %v216
        %v339 = vunpack.c.h.b16 %v216
        %v340 = vunpack.c.l.b16 %v217
        %v341 = vunpack.c.h.b16 %v217
        %v342 = vunpack.c.l.b16 %v218
        %v343 = vunpack.c.h.b16 %v218
        %v344 = vunpack.c.l.b16 %v219
        %v345 = vunpack.c.h.b16 %v219
        %v346 = vpack.c.b16 %v334, %v328
        %v347 = vpack.c.b16 %v335, %v329
        %v348 = vpack.c.b16 %v336, %v330
        %v349 = vpack.c.b16 %v337, %v331
        %v350 = vpack.c.b16 %v338, %v332
        %v351 = vpack.c.b16 %v339, %v333
        %v352 = vpack.c.b16 %v340, %v340
        %v353 = vpack.c.b16 %v341, %v341
        %v354 = vpack.c.b16 %v342, %v342
        %v355 = vpack.c.b16 %v343, %v343
        %v356 = vpack.c.b16 %v344, %v344
        %v357 = vpack.c.b16 %v345, %v345
        %v449 = vunpack.c.l.b16 %v220
        %v450 = vunpack.c.h.b16 %v220
        %v451 = vunpack.c.l.b16 %v221
        %v452 = vunpack.c.h.b16 %v221
        %v453 = vunpack.c.l.b16 %v222
        %v454 = vunpack.c.h.b16 %v222
        %v455 = vunpack.c.l.b16 %v223
        %v456 = vunpack.c.h.b16 %v223
        %v457 = vunpack.c.l.b16 %v224
        %v458 = vunpack.c.h.b16 %v224
        %v459 = vunpack.c.l.b16 %v225
        %v460 = vunpack.c.h.b16 %v225
        %v461 = vunpack.c.l.b16 %v226
        %v462 = vunpack.c.h.b16 %v226
        %v463 = vunpack.c.l.b16 %v227
        %v464 = vunpack.c.h.b16 %v227
        %v465 = vunpack.c.l.b16 %v228
        %v466 = vunpack.c.h.b16 %v228
        %v467 = vunpack.c.l.b16 %v229
        %v468 = vunpack.c.h.b16 %v229
        %v469 = vunpack.c.l.b16 %v230
        %v470 = vunpack.c.h.b16 %v230
        %v471 = vunpack.c.l.b16 %v231
        %v472 = vunpack.c.h.b16 %v231
        %v473 = vunpack.c.l.b16 %v232
        %v474 = vunpack.c.h.b16 %v232
        %v475 = vunpack.c.l.b16 %v233
        %v476 = vunpack.c.h.b16 %v233
        %v477 = vunpack.c.l.b16 %v234
        %v478 = vunpack.c.h.b16 %v234
        %v479 = vunpack.c.l.b16 %v235
        %v480 = vunpack.c.h.b16 %v235
        %v481 = vunpack.c.l.b16 %v236
        %v482 = vunpack.c.h.b16 %v236
        %v483 = vunpack.c.l.b16 %v237
        %v484 = vunpack.c.h.b16 %v237
        %v485 = vunpack.c.l.b16 %v238
        %v486 = vunpack.c.h.b16 %v238
        %v487 = vunpack.c.l.b16 %v239
        %v488 = vunpack.c.h.b16 %v239
        %v489 = vunpack.c.l.b16 %v240
        %v490 = vunpack.c.h.b16 %v240
        %v491 = vunpack.c.l.b16 %v241
        %v492 = vunpack.c.h.b16 %v241
        %v493 = vunpack.c.l.b16 %v242
        %v494 = vunpack.c.h.b16 %v242
        %v495 = vunpack.c.l.b16 %v243
        %v496 = vunpack.c.h.b16 %v243
        %v497 = vunpack.c.l.b16 %v244
        %v498 = vunpack.c.h.b16 %v244
        %v499 = vunpack.c.l.b16 %v245
        %v500 = vunpack.c.h.b16 %v245
        %v501 = vunpack.c.l.b16 %v246
        %v502 = vunpack.c.h.b16 %v246
        %v503 = vunpack.c.l.b16 %v247
        %v504 = vunpack.c.h.b16 %v247
        %v505 = vunpack.c.l.b16 %v248
        %v506 = vunpack.c.h.b16 %v248
        %v507 = vunpack.c.l.b16 %v249
        %v508 = vunpack.c.h.b16 %v249
        %v509 = vunpack.c.l.b16 %v250
        %v510 = vunpack.c.h.b16 %v250
        %v511 = vunpack.c.l.b16 %v251
        %v512 = vunpack.c.h.b16 %v251
        %v513 = vunpack.c.l.b16 %v252
        %v514 = vunpack.c.h.b16 %v252
        %v515 = vunpack.c.l.b16 %v253
        %v516 = vunpack.c.h.b16 %v253
        %v517 = vunpack.c.l.b16 %v254
        %v518 = vunpack.c.h.b16 %v254
        %v519 = vunpack.c.l.b16 %v255
        %v520 = vunpack.c.h.b16 %v255
        %v521 = vunpack.c.l.b16 %v256
        %v522 = vunpack.c.h.b16 %v256
        %v523 = vunpack.c.l.b16 %v257
        %v524 = vunpack.c.h.b16 %v257
        %v525 = vunpack.c.l.b16 %v258
        %v526 = vunpack.c.h.b16 %v258
        %v527 = vunpack.c.l.b16 %v259
        %v528 = vunpack.c.h.b16 %v259
        %v529 = vunpack.c.l.b16 %v260
        %v530 = vunpack.c.h.b16 %v260
        %v531 = vunpack.c.l.b16 %v261
        %v532 = vunpack.c.h.b16 %v261
        %v533 = vunpack.c.l.b16 %v262
        %v534 = vunpack.c.h.b16 %v262
        %v535 = vunpack.c.l.b16 %v263
        %v536 = vunpack.c.h.b16 %v263
        %v537 = vunpack.c.l.b16 %v264
        %v538 = vunpack.c.h.b16 %v264
        %v539 = vunpack.c.l.b16 %v265
        %v540 = vunpack.c.h.b16 %v265
        %v541 = vunpack.c.l.b16 %v266
        %v542 = vunpack.c.h.b16 %v266
        %v543 = vunpack.c.l.b16 %v267
        %v544 = vunpack.c.h.b16 %v267
        %v545 = vunpack.c.l.b16 %v268
        %v546 = vunpack.c.h.b16 %v268
        %v547 = vunpack.c.l.b16 %v269
        %v548 = vunpack.c.h.b16 %v269
        %v549 = vunpack.c.l.b16 %v270
        %v550 = vunpack.c.h.b16 %v270
        %v551 = vunpack.c.l.b16 %v271
        %v552 = vunpack.c.h.b16 %v271
        %v553 = vunpack.c.l.b16 %v272
        %v554 = vunpack.c.h.b16 %v272
        %v555 = vunpack.c.l.b16 %v273
        %v556 = vunpack.c.h.b16 %v273
        %v557 = vunpack.c.l.b16 %v274
        %v558 = vunpack.c.h.b16 %v274
        %v559 = vunpack.c.l.b16 %v275
        %v560 = vunpack.c.h.b16 %v275
        %v561 = vunpack.c.l.b16 %v276
        %v562 = vunpack.c.h.b16 %v276
        %v563 = vunpack.c.l.b16 %v277
        %v564 = vunpack.c.h.b16 %v277
        %v565 = vunpack.c.l.b16 %v278
        %v566 = vunpack.c.h.b16 %v278
        %v567 = vunpack.c.l.b16 %v279
        %v568 = vunpack.c.h.b16 %v279
        %v569 = vunpack.c.l.b16 %v280
        %v570 = vunpack.c.h.b16 %v280
        %v571 = vunpack.c.l.b16 %v281
        %v572 = vunpack.c.h.b16 %v281
        %v573 = vunpack.c.l.b16 %v282
        %v574 = vunpack.c.h.b16 %v282
        %v575 = vunpack.c.l.b16 %v283
        %v576 = vunpack.c.h.b16 %v283
        %v577 = vunpack.c.l.b16 %v284
        %v578 = vunpack.c.h.b16 %v284
        %v579 = vunpack.c.l.b16 %v285
        %v580 = vunpack.c.h.b16 %v285
        %v581 = vunpack.c.l.b16 %v286
        %v582 = vunpack.c.h.b16 %v286
        %v583 = vunpack.c.l.b16 %v287
        %v584 = vunpack.c.h.b16 %v287
        %v585 = vunpack.c.l.b16 %v288
        %v586 = vunpack.c.h.b16 %v288
        %v587 = vunpack.c.l.b16 %v289
        %v588 = vunpack.c.h.b16 %v289
        %v589 = vunpack.c.l.b16 %v290
        %v590 = vunpack.c.h.b16 %v290
        %v591 = vunpack.c.l.b16 %v291
        %v592 = vunpack.c.h.b16 %v291
        %v593 = vunpack.c.l.b16 %v292
        %v594 = vunpack.c.h.b16 %v292
        %v595 = vunpack.c.l.b16 %v293
        %v596 = vunpack.c.h.b16 %v293
        %v597 = vunpack.c.l.b16 %v294
        %v598 = vunpack.c.h.b16 %v294
        %v599 = vunpack.c.l.b16 %v295
        %v600 = vunpack.c.h.b16 %v295
        %v601 = vunpack.c.l.b16 %v296
        %v602 = vunpack.c.h.b16 %v296
        %v603 = vunpack.c.l.b16 %v297
        %v604 = vunpack.c.h.b16 %v297
        %v605 = vunpack.c.l.b16 %v298
        %v606 = vunpack.c.h.b16 %v298
        %v607 = vunpack.c.l.b16 %v299
        %v608 = vunpack.c.h.b16 %v299
        %v609 = vunpack.c.l.b16 %v300
        %v610 = vunpack.c.h.b16 %v300
        %v611 = vpack.c.b16 %v451, %v449
        %v612 = vpack.c.b16 %v452, %v450
        %v613 = vpack.c.b16 %v455, %v453
        %v614 = vpack.c.b16 %v456, %v454
        %v615 = vpack.c.b16 %v459, %v457
        %v616 = vpack.c.b16 %v460, %v458
        %v617 = vpack.c.b16 %v463, %v461
        %v618 = vpack.c.b16 %v464, %v462
        %v619 = vpack.c.b16 %v467, %v465
        %v620 = vpack.c.b16 %v468, %v466
        %v621 = vpack.c.b16 %v471, %v469
        %v622 = vpack.c.b16 %v472, %v470
        %v623 = vpack.c.b16 %v475, %v473
        %v624 = vpack.c.b16 %v476, %v474
        %v625 = vpack.c.b16 %v479, %v477
        %v626 = vpack.c.b16 %v480, %v478
        %v627 = vpack.c.b16 %v483, %v481
        %v628 = vpack.c.b16 %v484, %v482
        %v629 = vpack.c.b16 %v487, %v485
        %v630 = vpack.c.b16 %v488, %v486
        %v631 = vpack.c.b16 %v491, %v489
        %v632 = vpack.c.b16 %v492, %v490
        %v633 = vpack.c.b16 %v495, %v493
        %v634 = vpack.c.b16 %v496, %v494
        %v635 = vpack.c.b16 %v499, %v497
        %v636 = vpack.c.b16 %v500, %v498
        %v637 = vpack.c.b16 %v503, %v501
        %v638 = vpack.c.b16 %v504, %v502
        %v639 = vpack.c.b16 %v507, %v505
        %v640 = vpack.c.b16 %v508, %v506
        %v641 = vpack.c.b16 %v511, %v509
        %v642 = vpack.c.b16 %v512, %v510
        %v643 = vpack.c.b16 %v515, %v513
        %v644 = vpack.c.b16 %v516, %v514
        %v645 = vpack.c.b16 %v519, %v517
        %v646 = vpack.c.b16 %v520, %v518
        %v647 = vpack.c.b16 %v523, %v521
        %v648 = vpack.c.b16 %v524, %v522
        %v649 = vpack.c.b16 %v527, %v525
        %v650 = vpack.c.b16 %v528, %v526
        %v651 = vpack.c.b16 %v531, %v529
        %v652 = vpack.c.b16 %v532, %v530
        %v653 = vpack.c.b16 %v535, %v533
        %v654 = vpack.c.b16 %v536, %v534
        %v655 = vpack.c.b16 %v539, %v537
        %v656 = vpack.c.b16 %v540, %v538
        %v657 = vpack.c.b16 %v543, %v541
        %v658 = vpack.c.b16 %v544, %v542
        %v659 = vpack.c.b16 %v547, %v545
        %v660 = vpack.c.b16 %v548, %v546
        %v661 = vpack.c.b16 %v551, %v549
        %v662 = vpack.c.b16 %v552, %v550
        %v663 = vpack.c.b16 %v555, %v553
        %v664 = vpack.c.b16 %v556, %v554
        %v665 = vpack.c.b16 %v559, %v557
        %v666 = vpack.c.b16 %v560, %v558
        %v667 = vpack.c.b16 %v563, %v561
        %v668 = vpack.c.b16 %v564, %v562
        %v669 = vpack.c.b16 %v567, %v565
        %v670 = vpack.c.b16 %v568, %v566
        %v671 = vpack.c.b16 %v571, %v569
        %v672 = vpack.c.b16 %v572, %v570
        %v673 = vpack.c.b16 %v575, %v573
        %v674 = vpack.c.b16 %v576, %v574
        %v675 = vpack.c.b16 %v579, %v577
        %v676 = vpack.c.b16 %v580, %v578
        %v677 = vpack.c.b16 %v583, %v581
        %v678 = vpack.c.b16 %v584, %v582
        %v679 = vpack.c.b16 %v587, %v585
        %v680 = vpack.c.b16 %v588, %v586
        %v681 = vpack.c.b16 %v591, %v589
        %v682 = vpack.c.b16 %v592, %v590
        %v683 = vpack.c.b16 %v595, %v593
        %v684 = vpack.c.b16 %v596, %v594
        %v685 = vpack.c.b16 %v599, %v597
        %v686 = vpack.c.b16 %v600, %v598
        %v687 = vpack.c.b16 %v603, %v601
        %v688 = vpack.c.b16 %v604, %v602
        %v689 = vpack.c.b16 %v607, %v605
        %v690 = vpack.c.b16 %v608, %v606
        %v691 = vpack.c.b16 %v609, %v609
        %v692 = vpack.c.b16 %v610, %v610
        %vm773 = vcmask 64512
        %v775 = vsel %vm773, %v351, 0
        %v778 = vsel %vm773, %v357, 0
        %vm780 = vcmask 1043456
        %v782 = vsel %vm780, %v691, 0
        %v785 = vsel %vm780, %v692, 0
        %787 = vmatpush.bf16.msra.mxu0 %v625
        %788 = vmatpush.bf16.msra.mxu0 %v623
        %789 = vmatpush.bf16.msra.mxu0 %v621
        %790 = vmatpush.bf16.msra.mxu0 %v619
        %791 = vmatpush.bf16.msra.mxu0 %v617
        %792 = vmatpush.bf16.msra.mxu0 %v615
        %793 = vmatpush.bf16.msra.mxu0 %v613
        %794 = vmatpush.bf16.msra.mxu0 %v611
        %795 = vmatmul.bf16.gmra.mxu0 %v346
        %v796 = vpop.f32.mrf.mxu0
        %v797 = vadd.f32 %v307, %v796
        %v798 = vpop.f32.mrf.mxu0
        %v799 = vadd.f32 %v312, %v798
        %800 = vmatmul.bf16.gmra.mxu0 %v352
        %v801 = vpop.f32.mrf.mxu0
        %v802 = vadd.f32 %v317, %v801
        %v803 = vpop.f32.mrf.mxu0
        %804 = vdwg.mxu0
        %805 = vmatpush.bf16.msra.mxu0 %v641
        %806 = vmatpush.bf16.msra.mxu0 %v639
        %807 = vmatpush.bf16.msra.mxu0 %v637
        %808 = vmatpush.bf16.msra.mxu0 %v635
        %809 = vmatpush.bf16.msra.mxu0 %v633
        %810 = vmatpush.bf16.msra.mxu0 %v631
        %811 = vmatpush.bf16.msra.mxu0 %v629
        %812 = vmatpush.bf16.msra.mxu0 %v627
        %813 = vmatmul.bf16.gmra.mxu0 %v347
        %v814 = vpop.f32.mrf.mxu0
        %v815 = vadd.f32 %v797, %v814
        %v816 = vpop.f32.mrf.mxu0
        %v817 = vadd.f32 %v799, %v816
        %818 = vmatmul.bf16.gmra.mxu0 %v353
        %v819 = vpop.f32.mrf.mxu0
        %v820 = vadd.f32 %v802, %v819
        %v821 = vpop.f32.mrf.mxu0
        %822 = vdwg.mxu0
        %823 = vmatpush.bf16.msra.mxu0 %v657
        %824 = vmatpush.bf16.msra.mxu0 %v655
        %825 = vmatpush.bf16.msra.mxu0 %v653
        %826 = vmatpush.bf16.msra.mxu0 %v651
        %827 = vmatpush.bf16.msra.mxu0 %v649
        %828 = vmatpush.bf16.msra.mxu0 %v647
        %829 = vmatpush.bf16.msra.mxu0 %v645
        %830 = vmatpush.bf16.msra.mxu0 %v643
        %831 = vmatmul.bf16.gmra.mxu0 %v348
        %v832 = vpop.f32.mrf.mxu0
        %v833 = vadd.f32 %v815, %v832
        %v834 = vpop.f32.mrf.mxu0
        %v835 = vadd.f32 %v817, %v834
        %836 = vmatmul.bf16.gmra.mxu0 %v354
        %v837 = vpop.f32.mrf.mxu0
        %v838 = vadd.f32 %v820, %v837
        %v839 = vpop.f32.mrf.mxu0
        %840 = vdwg.mxu0
        %841 = vmatpush.bf16.msra.mxu0 %v673
        %842 = vmatpush.bf16.msra.mxu0 %v671
        %843 = vmatpush.bf16.msra.mxu0 %v669
        %844 = vmatpush.bf16.msra.mxu0 %v667
        %845 = vmatpush.bf16.msra.mxu0 %v665
        %846 = vmatpush.bf16.msra.mxu0 %v663
        %847 = vmatpush.bf16.msra.mxu0 %v661
        %848 = vmatpush.bf16.msra.mxu0 %v659
        %849 = vmatmul.bf16.gmra.mxu0 %v349
        %v850 = vpop.f32.mrf.mxu0
        %v851 = vadd.f32 %v833, %v850
        %v852 = vpop.f32.mrf.mxu0
        %v853 = vadd.f32 %v835, %v852
        %854 = vmatmul.bf16.gmra.mxu0 %v355
        %v855 = vpop.f32.mrf.mxu0
        %v856 = vadd.f32 %v838, %v855
        %v857 = vpop.f32.mrf.mxu0
        %858 = vdwg.mxu0
        %859 = vmatpush.bf16.msra.mxu0 %v689
        %860 = vmatpush.bf16.msra.mxu0 %v687
        %861 = vmatpush.bf16.msra.mxu0 %v685
        %862 = vmatpush.bf16.msra.mxu0 %v683
        %863 = vmatpush.bf16.msra.mxu0 %v681
        %864 = vmatpush.bf16.msra.mxu0 %v679
        %865 = vmatpush.bf16.msra.mxu0 %v677
        %866 = vmatpush.bf16.msra.mxu0 %v675
        %867 = vmatmul.bf16.gmra.mxu0 %v350
        %v868 = vpop.f32.mrf.mxu0
        %v869 = vadd.f32 %v851, %v868
        %v870 = vpop.f32.mrf.mxu0
        %v871 = vadd.f32 %v853, %v870
        %872 = vmatmul.bf16.gmra.mxu0 %v356
        %v873 = vpop.f32.mrf.mxu0
        %v874 = vadd.f32 %v856, %v873
        %v875 = vpop.f32.mrf.mxu0
        %876 = vdwg.mxu0
        %877 = vmatpush.bf16.msra.mxu0 0
        %878 = vmatpush.bf16.msra.mxu0 0
        %879 = vmatpush.bf16.msra.mxu0 0
        %880 = vmatpush.bf16.msra.mxu0 0
        %881 = vmatpush.bf16.msra.mxu0 0
        %882 = vmatpush.bf16.msra.mxu0 0
        %883 = vmatpush.bf16.msra.mxu0 0
        %884 = vmatpush.bf16.msra.mxu0 %v782
        %885 = vmatmul.bf16.gmra.mxu0 %v775
        %v886 = vpop.f32.mrf.mxu0
        %v887 = vadd.f32 %v869, %v886
        %v888 = vpop.f32.mrf.mxu0
        %v889 = vadd.f32 %v871, %v888
        %890 = vmatmul.bf16.gmra.mxu0 %v778
        %v891 = vpop.f32.mrf.mxu0
        %v892 = vadd.f32 %v874, %v891
        %v893 = vpop.f32.mrf.mxu0
        %894 = vdwg.mxu0
        %895 = vmatpush.bf16.msra.mxu0 %v626
        %896 = vmatpush.bf16.msra.mxu0 %v624
        %897 = vmatpush.bf16.msra.mxu0 %v622
        %898 = vmatpush.bf16.msra.mxu0 %v620
        %899 = vmatpush.bf16.msra.mxu0 %v618
        %900 = vmatpush.bf16.msra.mxu0 %v616
        %901 = vmatpush.bf16.msra.mxu0 %v614
        %902 = vmatpush.bf16.msra.mxu0 %v612
        %903 = vmatmul.bf16.gmra.mxu0 %v346
        %v904 = vpop.f32.mrf.mxu0
        %v905 = vadd.f32 %v307, %v904
        %v906 = vpop.f32.mrf.mxu0
        %v907 = vadd.f32 %v312, %v906
        %908 = vmatmul.bf16.gmra.mxu0 %v352
        %v909 = vpop.f32.mrf.mxu0
        %v910 = vadd.f32 %v317, %v909
        %v911 = vpop.f32.mrf.mxu0
        %912 = vdwg.mxu0
        %913 = vmatpush.bf16.msra.mxu0 %v642
        %914 = vmatpush.bf16.msra.mxu0 %v640
        %915 = vmatpush.bf16.msra.mxu0 %v638
        %916 = vmatpush.bf16.msra.mxu0 %v636
        %917 = vmatpush.bf16.msra.mxu0 %v634
        %918 = vmatpush.bf16.msra.mxu0 %v632
        %919 = vmatpush.bf16.msra.mxu0 %v630
        %920 = vmatpush.bf16.msra.mxu0 %v628
        %921 = vmatmul.bf16.gmra.mxu0 %v347
        %v922 = vpop.f32.mrf.mxu0
        %v923 = vadd.f32 %v905, %v922
        %v924 = vpop.f32.mrf.mxu0
        %v925 = vadd.f32 %v907, %v924
        %926 = vmatmul.bf16.gmra.mxu0 %v353
        %v927 = vpop.f32.mrf.mxu0
        %v928 = vadd.f32 %v910, %v927
        %v929 = vpop.f32.mrf.mxu0
        %930 = vdwg.mxu0
        %931 = vmatpush.bf16.msra.mxu0 %v658
        %932 = vmatpush.bf16.msra.mxu0 %v656
        %933 = vmatpush.bf16.msra.mxu0 %v654
        %934 = vmatpush.bf16.msra.mxu0 %v652
        %935 = vmatpush.bf16.msra.mxu0 %v650
        %936 = vmatpush.bf16.msra.mxu0 %v648
        %937 = vmatpush.bf16.msra.mxu0 %v646
        %938 = vmatpush.bf16.msra.mxu0 %v644
        %939 = vmatmul.bf16.gmra.mxu0 %v348
        %v940 = vpop.f32.mrf.mxu0
        %v941 = vadd.f32 %v923, %v940
        %v942 = vpop.f32.mrf.mxu0
        %v943 = vadd.f32 %v925, %v942
        %944 = vmatmul.bf16.gmra.mxu0 %v354
        %v945 = vpop.f32.mrf.mxu0
        %v946 = vadd.f32 %v928, %v945
        %v947 = vpop.f32.mrf.mxu0
        %948 = vdwg.mxu0
        %949 = vmatpush.bf16.msra.mxu0 %v674
        %950 = vmatpush.bf16.msra.mxu0 %v672
        %951 = vmatpush.bf16.msra.mxu0 %v670
        %952 = vmatpush.bf16.msra.mxu0 %v668
        %953 = vmatpush.bf16.msra.mxu0 %v666
        %954 = vmatpush.bf16.msra.mxu0 %v664
        %955 = vmatpush.bf16.msra.mxu0 %v662
        %956 = vmatpush.bf16.msra.mxu0 %v660
        %957 = vmatmul.bf16.gmra.mxu0 %v349
        %v958 = vpop.f32.mrf.mxu0
        %v959 = vadd.f32 %v941, %v958
        %v960 = vpop.f32.mrf.mxu0
        %v961 = vadd.f32 %v943, %v960
        %962 = vmatmul.bf16.gmra.mxu0 %v355
        %v963 = vpop.f32.mrf.mxu0
        %v964 = vadd.f32 %v946, %v963
        %v965 = vpop.f32.mrf.mxu0
        %966 = vdwg.mxu0
        %967 = vmatpush.bf16.msra.mxu0 %v690
        %968 = vmatpush.bf16.msra.mxu0 %v688
        %969 = vmatpush.bf16.msra.mxu0 %v686
        %970 = vmatpush.bf16.msra.mxu0 %v684
        %971 = vmatpush.bf16.msra.mxu0 %v682
        %972 = vmatpush.bf16.msra.mxu0 %v680
        %973 = vmatpush.bf16.msra.mxu0 %v678
        %974 = vmatpush.bf16.msra.mxu0 %v676
        %975 = vmatmul.bf16.gmra.mxu0 %v350
        %v976 = vpop.f32.mrf.mxu0
        %v977 = vadd.f32 %v959, %v976
        %v978 = vpop.f32.mrf.mxu0
        %v979 = vadd.f32 %v961, %v978
        %980 = vmatmul.bf16.gmra.mxu0 %v356
        %v981 = vpop.f32.mrf.mxu0
        %v982 = vadd.f32 %v964, %v981
        %v983 = vpop.f32.mrf.mxu0
        %984 = vdwg.mxu0
        %985 = vmatpush.bf16.msra.mxu0 0
        %986 = vmatpush.bf16.msra.mxu0 0
        %987 = vmatpush.bf16.msra.mxu0 0
        %988 = vmatpush.bf16.msra.mxu0 0
        %989 = vmatpush.bf16.msra.mxu0 0
        %990 = vmatpush.bf16.msra.mxu0 0
        %991 = vmatpush.bf16.msra.mxu0 0
        %992 = vmatpush.bf16.msra.mxu0 %v785
        %993 = vmatmul.bf16.gmra.mxu0 %v775
        %v994 = vpop.f32.mrf.mxu0
        %v995 = vadd.f32 %v977, %v994
        %v996 = vpop.f32.mrf.mxu0
        %v997 = vadd.f32 %v979, %v996
        %998 = vmatmul.bf16.gmra.mxu0 %v778
        %v999 = vpop.f32.mrf.mxu0
        %v1000 = vadd.f32 %v982, %v999
        %v1001 = vpop.f32.mrf.mxu0
        %1002 = vdwg.mxu0
        %v1003 = vpack.c.bf16 %v995, %v887
        %v1004 = vpack.c.bf16 %v997, %v889
        %v1005 = vpack.c.bf16 %v1000, %v892
        %1006 = vst [vmem:[%s207] sm:$0xff] %v1003
        %1007 = vst [vmem:[%s207 + $0x8] sm:$0xff] %v1004
        %1008 = vst [vmem:[%s207 + $0x10] sm:$0xff] %v1005
        %s1009 = sand.u32 %s97, 1
        %s1010 = scalar_lea.sflag [#allocation4], %s1009
        %s1011 = sand.u32 %s97, 1
        %s1012 = smul.addr %s1011, 24
        %s1013 = scalar_lea.vmem [#allocation7], %s1012
        // Predicated region
        $region41: #{tpu_custom_call.1} parent=31 // pred_check
          %p1014 = pneg %p107
        $region42: #{tpu_custom_call.1} parent=31 // pred_check_branch
          %1016 = sbr.rel (%p1014) target = $region44
        $region43: #{tpu_custom_call.1} parent=31 // pred_region
          %s1017 = smul.u32 2, %s21
          %1019 = vsyncadd %s1010, 0
          %s1020 = smul.addr %s1017, 4
          %s1021 = scalar_lea.hbm %s3, %s1020
          %s1022 = sshll.u32 %s1013, 4
          %s1023 = int_to_ptr.vmem [resolvable:$true] %s1022
          %s1024 = sshll.u32 %s1021, 4
          %s1025 = int_to_ptr.hbm [resolvable:$true] %s1024
          %1030 = dma.vmem_to_hbm [thread:$0]  %s1023, 384, %s1025, %s1010, 128, 256, 8
        $region44: #{tpu_custom_call.1} parent=31 // pred_fallthru
          _
      $region32: #{tpu_custom_call.1} parent=5 // pred_fallthru
        _
      %p1031 = scmp.le.s32.totalorder 2, %s16
      // Predicated region
      $region45: #{tpu_custom_call.1} parent=5 // pred_check
        %p1032 = pneg %p1031
      $region46: #{tpu_custom_call.1} parent=5 // pred_check_branch
        %1034 = sbr.rel (%p1032) target = $region48
      $region47: #{tpu_custom_call.1} parent=5 // pred_region
        %s1035 = ssub.s32 %s16, 2
        // Predicated region
        $region49: #{tpu_custom_call.1} parent=47 // pred_check
          %p1036 = pneg %p113
        $region50: #{tpu_custom_call.1} parent=47 // pred_check_branch
          %1038 = sbr.rel (%p1036) target = $region52
        $region51: #{tpu_custom_call.1} parent=47 // pred_region
          %s1039 = sand.u32 %s98, 1
          %s1040 = scalar_lea.sflag [#allocation4], %s1039
          %s1041 = sand.u32 %s98, 1
          %s1042 = smul.addr %s1041, 24
          %s1043 = scalar_lea.vmem [#allocation7], %s1042
          %1045 = dma.done %s1040, 384
        $region52: #{tpu_custom_call.1} parent=47 // pred_fallthru
          _
      $region48: #{tpu_custom_call.1} parent=5 // pred_fallthru
        _
    $region6: #{tpu_custom_call.1} parent=1 // loop_footer
      %s20 = sadd.s32 1, %s16
    $region7: #{tpu_custom_call.1} parent=1 // loop_footer_branch
      %15 = sbr.rel target = $region3
    $region8: #{tpu_custom_call.1} parent=1 // loop_exit
      _
    %1046 = vsyncpa [#allocation3], 1
    %s1047 = scalar_lea.sflag [#allocation3], 1
    %1048 = vsyncpa %s1047, 1
    %1049 = vsyncpa [#allocation6], 1
    %s1050 = scalar_lea.sflag [#allocation6], 1
    %1051 = vsyncpa %s1050, 1
    %1052 = vsyncpa [#allocation4], 1
    %s1053 = scalar_lea.sflag [#allocation4], 1
    %1054 = vsyncpa %s1053, 1

</llo_original>
